<compile_context>
chip_gen: v5e
topology: v5e:2x2
jax: 0.10.0
libtpu: 0.0.40
codegen_flags: <defaults>
</compile_context>

<pallas_src>
import jax
import jax.numpy as jnp
from jax.experimental import pallas as pl
from jax.experimental.pallas import tpu as pltpu  # noqa: F401  (TPU backend)

# ----------------------------- config ---------------------------------------
L = 2              # number of transformer blocks we adapt
B = 2              # batch
S = 8              # sequence length
H = 32             # hidden size (n_embd)
STYLE_DIM = 64     # style embedding dim
RANK = 8           # lora_rank
ALPHA = 16.0       # lora_alpha
SCALING = ALPHA / RANK
OQ = 3 * H         # qkv out features (96)
M = B * S          # flattened tokens (16)
PACKED = OQ + H    # 96 + 32 = 128 lanes per layer (qkv || out)
KB = L * H + B     # merged contraction dim: all layers' hidden + one-hot (66)
RB = L * 2 * RANK + B  # merged low-rank dim: (qkv+out rank)*L + batch (34)
OUTW = L * PACKED  # 256 -> one lane-dense output slab for both layers
assert PACKED == 128 and M % 8 == 0


# ------------------------- Pallas kernel -------------------------------------
def adapter_kernel(x_ref, a_ref, b_ref, o_ref):
    """All LoRA adapters (both layers) + style conditioning in two matmuls.

    x_ref: [M, KB]     [h_layer0 | h_layer1 | one-hot(batch)]
    a_ref: [KB, RB]    block-diag [A_qkv^l | A_out^l] per layer, + I_B passthrough
    b_ref: [RB, OUTW]  block-diag [Bq^l*scl | Bo^l*scl] per layer, + style rows
    o_ref: [M, OUTW]   packed (qkv0 | out0+style | qkv1 | out1+style), lane-dense
    """
    low = jnp.dot(x_ref[...], a_ref[...], preferred_element_type=jnp.float32)
    o_ref[...] = jnp.dot(low, b_ref[...], preferred_element_type=jnp.float32)


# --------------------------- wrapper ------------------------------------------
def style_adapter_forward(hidden_states, style_emb, params):
    """hidden_states: [L, B, S, H]; style_emb: [B, STYLE_DIM].

    Returns (qkv_lora [L,B,S,3H], out_lora [L,B,S,H], new_hidden [L,B,S,H]).
    """
    wp, bp, aq, bq, ao, bo = (params[k] for k in
                              ("wp", "bp", "aq", "bq", "ao", "bo"))
    f32 = jnp.float32

    # --- trace-time / XLA-fused prep (no extra pallas launch) ----------------
    # Style projection: tiny [B,64]x[64,H] matmul — left to XLA.
    style_cond = style_emb @ wp + bp                                    # [B, H]

    # One-hot batch indicator per flattened token (row m -> batch m // S):
    # turns the per-token style broadcast into matmul rows.
    onehot = jnp.repeat(jnp.eye(B, dtype=f32), S, axis=0)               # [M, B]

    # Stack both layers' hidden states side-by-side along lanes so ONE matmul
    # serves every adapter of every layer.
    x_flat = hidden_states.reshape(L, M, H)                             # [L,M,H]
    x_big = jnp.concatenate(
        [x_flat.transpose(1, 0, 2).reshape(M, L * H), onehot], axis=-1)  # [M,KB]

    # Block-diagonal merged LoRA-A (+ identity passthrough for the one-hot).
    a_big = jnp.zeros((KB, RB), f32)
    # Block-diagonal merged LoRA-B with SCALING folded in; style rows add
    # style_cond onto each layer's out-proj lanes per token.
    b_big = jnp.zeros((RB, OUTW), f32)
    for l in range(L):
        r0 = l * 2 * RANK
        c0 = l * PACKED
        a_big = a_big.at[l * H:(l + 1) * H, r0:r0 + RANK].set(aq[l])
        a_big = a_big.at[l * H:(l + 1) * H, r0 + RANK:r0 + 2 * RANK].set(ao[l])
        b_big = b_big.at[r0:r0 + RANK, c0:c0 + OQ].set(bq[l] * SCALING)
        b_big = b_big.at[r0 + RANK:r0 + 2 * RANK, c0 + OQ:c0 + PACKED].set(
            bo[l] * SCALING)
        b_big = b_big.at[L * 2 * RANK:, c0 + OQ:c0 + PACKED].set(style_cond)
    a_big = a_big.at[L * H:, L * 2 * RANK:].set(jnp.eye(B, dtype=f32))

    flops = 2 * M * KB * RB + 2 * M * RB * OUTW
    bytes_accessed = 4 * (M * KB + KB * RB + RB * OUTW + M * OUTW)

    # Single invocation, no grid: everything sits in VMEM as whole-array
    # blocks; output last dim is 256 (2x128) -> unmasked lane-dense stores.
    packed_big = pl.pallas_call(
        adapter_kernel,
        out_shape=jax.ShapeDtypeStruct((M, OUTW), f32),
        cost_estimate=pl.CostEstimate(flops=flops, transcendentals=0,
                                      bytes_accessed=bytes_accessed),
    )(x_big, a_big, b_big)

    # [M, L*128] -> [L, B, S, 128]; cheap layout plumbing, fused by XLA.
    packed = packed_big.reshape(M, L, PACKED).transpose(1, 0, 2)
    packed = packed.reshape(L, B, S, PACKED)
    qkv_lora = packed[..., :OQ]
    out_lora = packed[..., OQ:]
    new_hidden = hidden_states + out_lora   # residual add fused by XLA
    return qkv_lora, out_lora, new_hidden


# ----------------------- deterministic params --------------------------------
def init_params(key):
    ks = jax.random.split(key, 6)
    # nn.Linear(style_dim, H)
    wp = jax.random.uniform(ks[0], (STYLE_DIM, H), jnp.float32, -0.05, 0.05)
    bp = jax.random.uniform(ks[1], (H,), jnp.float32, -0.05, 0.05)
    # LoRA A (kaiming-uniform-like) and B per layer.  (Reference inits B to
    # zeros; we use small random values so the kernel output is non-trivial.)
    aq = jax.random.uniform(ks[2], (L, H, RANK), jnp.float32, -0.3, 0.3)
    bq = jax.random.uniform(ks[3], (L, RANK, OQ), jnp.float32, -0.3, 0.3)
    ao = jax.random.uniform(ks[4], (L, H, RANK), jnp.float32, -0.3, 0.3)
    bo = jax.random.uniform(ks[5], (L, RANK, H), jnp.float32, -0.3, 0.3)
    return dict(wp=wp, bp=bp, aq=aq, bq=bq, ao=ao, bo=bo)


def reference_forward(hidden_states, style_emb, p):
    style_cond = style_emb @ p["wp"] + p["bp"]                        # [B, H]
    qkv = jnp.einsum("lbsh,lhr,lro->lbso",
                     hidden_states, p["aq"], p["bq"]) * SCALING
    out = (jnp.einsum("lbsh,lhr,lro->lbso",
                      hidden_states, p["ao"], p["bo"]) * SCALING
           + style_cond[None, :, None, :])
    hid = hidden_states + out
    return qkv, out, hid


# ------------------------------- main ----------------------------------------
if __name__ == "__main__":
    key = jax.random.PRNGKey(0)
    k_h, k_s, k_p = jax.random.split(key, 3)

    hidden_states = jax.random.normal(k_h, (L, B, S, H), jnp.float32)
    style_emb = jax.random.normal(k_s, (B, STYLE_DIM), jnp.float32)
    params = init_params(k_p)

    qkv, out, hid = style_adapter_forward(hidden_states, style_emb, params)
    jax.block_until_ready((qkv, out, hid))

    # sanity check against a plain-JAX reference
    qkv_r, out_r, hid_r = reference_forward(hidden_states, style_emb, params)
    assert jnp.allclose(qkv, qkv_r, atol=1e-4), "qkv_lora mismatch"
    assert jnp.allclose(out, out_r, atol=1e-4), "out_lora mismatch"
    assert jnp.allclose(hid, hid_r, atol=1e-4), "hidden mismatch"

    print("KERNEL_OK")
</pallas_src>

<mosaic_0001>
module attributes {stable_mosaic.version = 11 : i64} {
  func.func @adapter_kernel(%arg0: memref<16x66xf32, #tpu.memory_space<vmem>>, %arg1: memref<66x34xf32, #tpu.memory_space<vmem>>, %arg2: memref<34x256xf32, #tpu.memory_space<vmem>>, %arg3: memref<16x256xf32, #tpu.memory_space<vmem>>) attributes {dimension_semantics = [], scalar_prefetch = 0 : i64, scratch_operands = 0 : i64, tpu.core_type = #tpu.core_type<tc>} {
    %c0 = arith.constant 0 : index
    %c0_0 = arith.constant 0 : index
    %0 = vector.load %arg0[%c0, %c0_0] : memref<16x66xf32, #tpu.memory_space<vmem>>, vector<16x66xf32>
    %c0_1 = arith.constant 0 : index
    %c0_2 = arith.constant 0 : index
    %1 = vector.load %arg1[%c0_1, %c0_2] : memref<66x34xf32, #tpu.memory_space<vmem>>, vector<66x34xf32>
    %cst = arith.constant dense<0.000000e+00> : vector<16x34xf32>
    %2 = tpu.matmul %0, %1, %cst {dimension_numbers = #tpu.dot_dimension_numbers<[1], [0], [0], [1], [0, 0, 1, 1], [], []>} : vector<16x66xf32>, vector<66x34xf32>, vector<16x34xf32> -> vector<16x34xf32>
    %c0_3 = arith.constant 0 : index
    %c0_4 = arith.constant 0 : index
    %3 = vector.load %arg2[%c0_3, %c0_4] : memref<34x256xf32, #tpu.memory_space<vmem>>, vector<34x256xf32>
    %cst_5 = arith.constant dense<0.000000e+00> : vector<16x256xf32>
    %4 = tpu.matmul %2, %3, %cst_5 {dimension_numbers = #tpu.dot_dimension_numbers<[1], [0], [0], [1], [0, 0, 1, 1], [], []>} : vector<16x34xf32>, vector<34x256xf32>, vector<16x256xf32> -> vector<16x256xf32>
    %c0_6 = arith.constant 0 : index
    %c0_7 = arith.constant 0 : index
    %5 = vector.load %arg3[%c0_6, %c0_7] : memref<16x256xf32, #tpu.memory_space<vmem>>, vector<16x256xf32>
    tpu.vector_store %arg3[%c0_6, %c0_7], %4 {strides = array<i32>} : memref<16x256xf32, #tpu.memory_space<vmem>>, vector<16x256xf32>,
    return
  }
}

</mosaic_0001>

<llo_original>
// kernel: tpu_custom_call.1
$region0: #{tpu_custom_call.1}
  #allocation0 [shape = 'u32[]', space=smem, size = 0x4, offset = 0x4, fixed_abs, tag = 'smem constant byte address 0x4 - core index']
  #allocation1 [shape = 'u32[72,128]{1,0:T(1,128)}', space=vmem, size = 0x9000, scoped, tag = 'internal scratch']
  %s0 = inlined_call_operand.vmem [shape: f32[16,66], index: 0, kind: input, shape index: {}]
  %s1 = inlined_call_operand.vmem [shape: f32[66,34], index: 1, kind: input, shape index: {}]
  %s2 = inlined_call_operand.vmem [shape: f32[34,256], index: 2, kind: input, shape index: {}]
  %s3 = inlined_call_operand.hbm [shape: f32[16,256], index: 3, kind: output, shape index: {}]
  %s4 = sld [smem:[#allocation0]]
  $region22: #{tpu_custom_call.1} parent=0
    _
  %s6 = ssub.s32 1, %s4
  %s7 = scalar_select 0, %s6, %s4
  $region1: #{tpu_custom_call.1} parent=0
    #allocation2 [shape = 'u8[16384]{0}', space=vmem, size = 0x4000, scoped, tag = 'output window, operand 0, single buffered']
    #allocation3 [shape = 's32[1]{0}', space=sflag, size = 0x4, scoped, tag = 'scoped memory for tpu_custom_call.1']
    %8 = vsyncpa [#allocation3], 0
    // Predicated region
    $region2: #{tpu_custom_call.1} parent=1 // pred_check
      _
    $region3: #{tpu_custom_call.1} parent=1 // pred_check_branch
      %10 = sbr.rel (0) target = $region5
    $region4: #{tpu_custom_call.1} parent=1 // pred_region
      _
    $region5: #{tpu_custom_call.1} parent=1 // pred_fallthru
      _
    // Predicated region
    $region6: #{tpu_custom_call.1} parent=1 // pred_check
      _
    $region7: #{tpu_custom_call.1} parent=1 // pred_check_branch
      %12 = sbr.rel (0) target = $region9
    $region8: #{tpu_custom_call.1} parent=1 // pred_region
      _
    $region9: #{tpu_custom_call.1} parent=1 // pred_fallthru
      _
    // Predicated region
    $region10: #{tpu_custom_call.1} parent=1 // pred_check
      _
    $region11: #{tpu_custom_call.1} parent=1 // pred_check_branch
      %14 = sbr.rel (0) target = $region13
    $region12: #{tpu_custom_call.1} parent=1 // pred_region
      _
    $region13: #{tpu_custom_call.1} parent=1 // pred_fallthru
      _
    %v15 = vld [vmem:[%s0] sm:$0xff]
    %v16 = vld [vmem:[%s0 + $0x8] sm:$0xff]
    %v17 = vld [vmem:[%s1] sm:$0xff]
    %v18 = vld [vmem:[%s1 + $0x8] sm:$0xff]
    %v19 = vld [vmem:[%s1 + $0x10] sm:$0xff]
    %v20 = vld [vmem:[%s1 + $0x18] sm:$0xff]
    %v21 = vld [vmem:[%s1 + $0x20] sm:$0xff]
    %v22 = vld [vmem:[%s1 + $0x28] sm:$0xff]
    %v23 = vld [vmem:[%s1 + $0x30] sm:$0xff]
    %v24 = vld [vmem:[%s1 + $0x38] sm:$0xff]
    %v25 = vld [vmem:[%s1 + $0x40] sm:$0x3]
    %vm26 = vcmask 539648
    %v28 = vsel %vm26, %v15, 0
    %v31 = vsel %vm26, %v16, 0
    %vm33 = vcmask 1041408
    %v35 = vsel %vm33, %v25, 0
    %37 = vmatpush.msra.mxu0 0.0
    %38 = vmatpush.msra.mxu0 0.0
    %39 = vmatpush.msra.mxu0 0.0
    %40 = vmatpush.msra.mxu0 0.0
    %41 = vmatpush.msra.mxu0 0.0
    %42 = vmatpush.msra.mxu0 0.0
    %43 = vmatpush.msra.mxu0 0.0
    %44 = vmatpush.msra.mxu0 %v35
    %45 = vmatpush.msra.mxu0 %v24
    %46 = vmatpush.msra.mxu0 %v23
    %47 = vmatpush.msra.mxu0 %v22
    %48 = vmatpush.msra.mxu0 %v21
    %49 = vmatpush.msra.mxu0 %v20
    %50 = vmatpush.msra.mxu0 %v19
    %51 = vmatpush.msra.mxu0 %v18
    %52 = vmatpush.msra.mxu0 %v17
    %53 = vmatmul.f32.gmra.mxu0 %v28
    %v54 = vpop.f32.mrf.mxu0
    %v55 = vadd.f32 0.0, %v54
    %56 = vmatmul.f32.gmra.mxu0 %v31
    %v57 = vpop.f32.mrf.mxu0
    %v58 = vadd.f32 0.0, %v57
    %59 = vdwg.mxu0
    %v60 = vld [vmem:[%s2] sm:$0xff]
    %v61 = vld [vmem:[%s2 + $0x8] sm:$0xff]
    %v62 = vld [vmem:[%s2 + $0x10] sm:$0xff]
    %v63 = vld [vmem:[%s2 + $0x18] sm:$0xff]
    %v64 = vld [vmem:[%s2 + $0x20] sm:$0xff]
    %v65 = vld [vmem:[%s2 + $0x28] sm:$0xff]
    %v66 = vld [vmem:[%s2 + $0x30] sm:$0xff]
    %v67 = vld [vmem:[%s2 + $0x38] sm:$0xff]
    %v68 = vld [vmem:[%s2 + $0x40] sm:$0x3]
    %v69 = vld [vmem:[%s2 + $0x48] sm:$0x3]
    %vm70 = vcmask 277504
    %v72 = vsel %vm70, %v55, 0
    %v75 = vsel %vm70, %v58, 0
    %v78 = vsel %vm33, %v68, 0
    %v81 = vsel %vm33, %v69, 0
    %83 = vmatpush.msra.mxu0 0.0
    %84 = vmatpush.msra.mxu0 0.0
    %85 = vmatpush.msra.mxu0 0.0
    %86 = vmatpush.msra.mxu0 0.0
    %87 = vmatpush.msra.mxu0 0.0
    %88 = vmatpush.msra.mxu0 0.0
    %89 = vmatpush.msra.mxu0 0.0
    %90 = vmatpush.msra.mxu0 0.0
    %91 = vmatpush.msra.mxu0 0.0
    %92 = vmatpush.msra.mxu0 0.0
    %93 = vmatpush.msra.mxu0 0.0
    %94 = vmatpush.msra.mxu0 %v78
    %95 = vmatpush.msra.mxu0 %v66
    %96 = vmatpush.msra.mxu0 %v64
    %97 = vmatpush.msra.mxu0 %v62
    %98 = vmatpush.msra.mxu0 %v60
    %99 = vmatmul.f32.gmra.mxu0 %v72
    %v100 = vpop.f32.mrf.mxu0
    %v101 = vadd.f32 0.0, %v100
    %102 = vmatmul.f32.gmra.mxu0 %v75
    %v103 = vpop.f32.mrf.mxu0
    %v104 = vadd.f32 0.0, %v103
    %105 = vdwg.mxu0
    %106 = vmatpush.msra.mxu0 0.0
    %107 = vmatpush.msra.mxu0 0.0
    %108 = vmatpush.msra.mxu0 0.0
    %109 = vmatpush.msra.mxu0 0.0
    %110 = vmatpush.msra.mxu0 0.0
    %111 = vmatpush.msra.mxu0 0.0
    %112 = vmatpush.msra.mxu0 0.0
    %113 = vmatpush.msra.mxu0 0.0
    %114 = vmatpush.msra.mxu0 0.0
    %115 = vmatpush.msra.mxu0 0.0
    %116 = vmatpush.msra.mxu0 0.0
    %117 = vmatpush.msra.mxu0 %v81
    %118 = vmatpush.msra.mxu0 %v67
    %119 = vmatpush.msra.mxu0 %v65
    %120 = vmatpush.msra.mxu0 %v63
    %121 = vmatpush.msra.mxu0 %v61
    %122 = vmatmul.f32.gmra.mxu0 %v72
    %v123 = vpop.f32.mrf.mxu0
    %v124 = vadd.f32 0.0, %v123
    %125 = vmatmul.f32.gmra.mxu0 %v75
    %v126 = vpop.f32.mrf.mxu0
    %v127 = vadd.f32 0.0, %v126
    %128 = vdwg.mxu0
    %129 = vst [vmem:[#allocation2] sm:$0xff] %v101
    %130 = vst [vmem:[#allocation2 + $0x8] sm:$0xff] %v124
    %131 = vst [vmem:[#allocation2 + $0x10] sm:$0xff] %v104
    %132 = vst [vmem:[#allocation2 + $0x18] sm:$0xff] %v127
    // Predicated region
    $region14: #{tpu_custom_call.1} parent=1 // pred_check
      _
    $region15: #{tpu_custom_call.1} parent=1 // pred_check_branch
      %134 = sbr.rel (0) target = $region17
    $region16: #{tpu_custom_call.1} parent=1 // pred_region
      %136 = vsyncadd [#allocation3], 0
      %s137 = sshll.u32 [#allocation2], 4
      %s138 = int_to_ptr.vmem [resolvable:$true] %s137
      %s139 = sshll.u32 %s3, 4
      %s140 = int_to_ptr.hbm [resolvable:$true] %s139
      %145 = dma.vmem_to_hbm [thread:$0]  %s138, 512, %s140, [#allocation3], 256, 256, 16
    $region17: #{tpu_custom_call.1} parent=1 // pred_fallthru
      _
    // Predicated region
    $region18: #{tpu_custom_call.1} parent=1 // pred_check
      _
    $region19: #{tpu_custom_call.1} parent=1 // pred_check_branch
      %147 = sbr.rel (0) target = $region21
    $region20: #{tpu_custom_call.1} parent=1 // pred_region
      %149 = dma.done [#allocation3], 512
    $region21: #{tpu_custom_call.1} parent=1 // pred_fallthru
      _
    %150 = vsyncpa [#allocation3], 1

</llo_original>
